<compile_context>
chip_gen: v5e
topology: v5e:2x2
jax: 0.10.0
libtpu: 0.0.40
codegen_flags: <defaults>
</compile_context>

<pallas_src>
import functools

import jax
import jax.numpy as jnp
from jax.experimental import pallas as pl
from jax.experimental.pallas import tpu as pltpu

_LANES = 128


def _default_block_rows():
    """Chip-aware tile height (rows of 128 boxes per row)."""
    try:
        kind = jax.devices()[0].device_kind.lower()
    except Exception:
        return 512
    if 'v5' in kind:                  # 16 MiB default scoped VMEM
        return 256
    if 'v7' in kind or '7x' in kind:  # 3.2 TB/s HBM -> bigger tiles; raise vmem limit
        return 1024
    return 512                        # v6e sweet spot (85% of HBM roofline)


def _box_losses(p, t, loss_type):
    """p, t: (6, TR, 128) f32 slabs -> (TR, 128) per-box losses."""
    p_l, p_t, p_f, p_r, p_b, p_k = (p[i] for i in range(6))
    t_l, t_t, t_f, t_r, t_b, t_k = (t[i] for i in range(6))

    # Full-slab min/max once, then cheap leading-axis slices.
    mins = jnp.minimum(p, t)
    maxs = jnp.maximum(p, t)
    m_l, m_t, m_f, m_r, m_b, m_k = (mins[i] for i in range(6))
    g_l, g_t, g_f, g_r, g_b, g_k = (maxs[i] for i in range(6))

    target_volume = (t_l + t_r) * (t_t + t_b) * (t_f + t_k)
    pred_volume = (p_l + p_r) * (p_t + p_b) * (p_f + p_k)

    w_intersect = m_l + m_r
    h_intersect = m_b + m_t
    d_intersect = m_f + m_k
    g_w = g_l + g_r
    g_h = g_b + g_t
    g_d = g_f + g_k

    ac_union = g_w * g_h * g_d + 1e-07
    vol_intersect = w_intersect * h_intersect * d_intersect
    vol_union = target_volume + pred_volume - vol_intersect
    ious = (vol_intersect + 1.0) / (vol_union + 1.0)

    if loss_type == 'iou':
        return -jnp.log(ious)
    if loss_type == 'linear_iou':
        return 1.0 - ious
    if loss_type == 'giou':
        gious = ious - (ac_union - vol_union) / ac_union
        return 1.0 - gious
    raise NotImplementedError(loss_type)


def _valid_mask(n, tr, pid):
    """(TR, 128) f32 mask: 1.0 where the flattened box index < n."""
    row = jax.lax.broadcasted_iota(jnp.int32, (tr, _LANES), 0)
    lane = jax.lax.broadcasted_iota(jnp.int32, (tr, _LANES), 1)
    gidx = pid * (tr * _LANES) + row * _LANES + lane
    return (gidx < n).astype(jnp.float32)


def _fold_sublanes(x, tr):
    """(TR, 128) -> (8, 128): pairwise-tree sum of 8-sublane groups (pure VPU)."""
    parts = [x[r:r + 8] for r in range(0, tr, 8)]
    while len(parts) > 1:
        nxt = [parts[i] + parts[i + 1] for i in range(0, len(parts) - 1, 2)]
        if len(parts) % 2:
            nxt.append(parts[-1])
        parts = nxt
    return parts[0]


def _iou_loss_kernel(n_ref, pred_ref, targ_ref, out_ref, *, loss_type, tr):
    losses = _box_losses(pred_ref[...], targ_ref[...], loss_type)
    if loss_type == 'giou':
        # Padding only lives in the last tile, and only 'giou' gives padded
        # all-zero boxes a nonzero (=1.0) loss -> mask just there.
        pid = pl.program_id(0)
        last = pl.num_programs(0) - 1

        @pl.when(pid == last)
        def _():
            out_ref[0] = _fold_sublanes(
                losses * _valid_mask(n_ref[0], tr, pid), tr)

        @pl.when(pid != last)
        def _():
            out_ref[0] = _fold_sublanes(losses, tr)
    else:
        # Padded boxes give exactly 0 loss for 'iou'/'linear_iou': no mask.
        out_ref[0] = _fold_sublanes(losses, tr)


def _iou_loss_kernel_weighted(n_ref, pred_ref, targ_ref, w_ref, out_ref, *,
                              loss_type, tr):
    losses = _box_losses(pred_ref[...], targ_ref[...], loss_type)
    w = w_ref[...]                       # padded lanes of w are already 0
    out_ref[0, 1] = _fold_sublanes(losses * w, tr)   # weighted partial sum
    out_ref[0, 2] = _fold_sublanes(w, tr)            # sum(weight) partial
    if loss_type == 'giou':
        pid = pl.program_id(0)
        last = pl.num_programs(0) - 1

        @pl.when(pid == last)
        def _():
            out_ref[0, 0] = _fold_sublanes(
                losses * _valid_mask(n_ref[0], tr, pid), tr)

        @pl.when(pid != last)
        def _():
            out_ref[0, 0] = _fold_sublanes(losses, tr)
    else:
        out_ref[0, 0] = _fold_sublanes(losses, tr)


@functools.partial(jax.jit, static_argnames=('loss_type', 'block_rows'))
def iou_loss(pred, target, weight=None, loss_type='iou', block_rows=None):
    """Pallas equivalent of IOULoss.forward.

    pred, target: (N, 6); weight: optional (N,). Returns a scalar f32."""
    if loss_type not in ('iou', 'linear_iou', 'giou'):
        raise NotImplementedError(loss_type)
    pred = jnp.asarray(pred, jnp.float32)
    target = jnp.asarray(target, jnp.float32)
    n = pred.shape[0]

    if block_rows is None:
        block_rows = _default_block_rows()
    block_rows = max(8, (block_rows // 8) * 8)

    rows = max(1, -(-n // _LANES))            # 128-lane rows needed
    rows8 = ((rows + 7) // 8) * 8             # round up to sublane tile
    num_tiles = -(-rows8 // block_rows)
    if num_tiles == 1 and rows8 >= 16:
        num_tiles = 2                         # let megacore split the grid
    tr = ((-(-rows8 // num_tiles) + 7) // 8) * 8   # balanced tile height
    num_tiles = -(-rows8 // tr)
    total_rows = num_tiles * tr
    n_pad = total_rows * _LANES

    # TODO(synk): the module's (N, 6) interface forces this transpose+pad; an
    # upstream producer emitting (6, R, 128) directly (or verified
    # allow_input_fusion) would remove ~2x the kernel's own HBM traffic.
    # Under jit the pad/transpose/reshape at least fuse into one relayout.
    def _prep(x):
        xt = jnp.pad(x.T, ((0, 0), (0, n_pad - n)))
        return xt.reshape(6, total_rows, _LANES)

    p = _prep(pred)
    t = _prep(target)
    n_arr = jnp.array([n], jnp.int32)     # scalar-prefetch arg (SMEM)

    box_spec = pl.BlockSpec((6, tr, _LANES), lambda i, n_ref: (0, i, 0))
    cparams_kwargs = dict(dimension_semantics=("parallel",))
    if tr > 512:
        # v7x path: physical VMEM 64 MiB, default scoped limit only 32 MiB.
        cparams_kwargs['vmem_limit_bytes'] = 48 * 1024 * 1024
    # TODO(synk): if xprof shows no 2-core split with "parallel" on v7x, try
    # pltpu.CORE_PARALLEL here.
    cparams = pltpu.CompilerParams(**cparams_kwargs)

    transcendentals = n_pad if loss_type == 'iou' else 0

    if weight is None:
        out = pl.pallas_call(
            functools.partial(_iou_loss_kernel, loss_type=loss_type, tr=tr),
            out_shape=jax.ShapeDtypeStruct((num_tiles, 8, _LANES), jnp.float32),
            grid_spec=pltpu.PrefetchScalarGridSpec(
                num_scalar_prefetch=1,
                grid=(num_tiles,),
                in_specs=[box_spec, box_spec],
                out_specs=pl.BlockSpec((1, 8, _LANES),
                                       lambda i, n_ref: (i, 0, 0))),
            compiler_params=cparams,
            cost_estimate=pl.CostEstimate(
                flops=40 * n_pad,
                transcendentals=transcendentals,
                bytes_accessed=2 * 6 * n_pad * 4 + num_tiles * 8 * _LANES * 4),
        )(n_arr, p, t)
        return jnp.sum(out)

    w = jnp.pad(jnp.asarray(weight, jnp.float32),
                (0, n_pad - n)).reshape(total_rows, _LANES)
    out = pl.pallas_call(
        functools.partial(_iou_loss_kernel_weighted, loss_type=loss_type, tr=tr),
        out_shape=jax.ShapeDtypeStruct((num_tiles, 3, 8, _LANES), jnp.float32),
        grid_spec=pltpu.PrefetchScalarGridSpec(
            num_scalar_prefetch=1,
            grid=(num_tiles,),
            in_specs=[box_spec, box_spec,
                      pl.BlockSpec((tr, _LANES), lambda i, n_ref: (i, 0))],
            out_specs=pl.BlockSpec((1, 3, 8, _LANES),
                                   lambda i, n_ref: (i, 0, 0, 0))),
        compiler_params=cparams,
        cost_estimate=pl.CostEstimate(
            flops=45 * n_pad,
            transcendentals=transcendentals,
            bytes_accessed=13 * n_pad * 4 + num_tiles * 3 * 8 * _LANES * 4),
    )(n_arr, p, t, w)

    sums = jnp.sum(out, axis=(0, 2, 3))   # [unweighted, weighted, sum(weight)]
    # Runtime branch on weight.sum() > 0 (matches the PyTorch module).
    return jnp.where(sums[2] > 0, sums[1], sums[0])


def _reference(pred, target, weight=None, loss_type='iou'):
    pred = jnp.asarray(pred, jnp.float32)
    target = jnp.asarray(target, jnp.float32)
    pl_, pt, pf, pr, pb, pk = [pred[:, i] for i in range(6)]
    tl, tt, tf, tr_, tb, tk = [target[:, i] for i in range(6)]
    tv = (tl + tr_) * (tt + tb) * (tf + tk)
    pv = (pl_ + pr) * (pt + pb) * (pf + pk)
    wi = jnp.minimum(pl_, tl) + jnp.minimum(pr, tr_)
    gwi = jnp.maximum(pl_, tl) + jnp.maximum(pr, tr_)
    hi = jnp.minimum(pb, tb) + jnp.minimum(pt, tt)
    ghi = jnp.maximum(pb, tb) + jnp.maximum(pt, tt)
    di = jnp.minimum(pf, tf) + jnp.minimum(pk, tk)
    gdi = jnp.maximum(pf, tf) + jnp.maximum(pk, tk)
    ac = gwi * ghi * gdi + 1e-07
    vi = wi * hi * di
    vu = tv + pv - vi
    ious = (vi + 1.0) / (vu + 1.0)
    gious = ious - (ac - vu) / ac
    if loss_type == 'iou':
        losses = -jnp.log(ious)
    elif loss_type == 'linear_iou':
        losses = 1.0 - ious
    else:
        losses = 1.0 - gious
    if weight is not None:
        weight = jnp.asarray(weight, jnp.float32)
        return jnp.where(weight.sum() > 0, (losses * weight).sum(),
                         losses.sum())
    return losses.sum()


if __name__ == "__main__":
    key = jax.random.PRNGKey(0)
    k1, k2, k3 = jax.random.split(key, 3)

    ok = True

    def _check(n, brows, loss_type, w_kind, pred, target, weight):
        global ok
        w = {'none': None, 'rand': weight,
             'zero': jnp.zeros((n,), jnp.float32)}[w_kind]
        got = jax.block_until_ready(
            iou_loss(pred, target, weight=w, loss_type=loss_type,
                     block_rows=brows))
        ref = _reference(pred, target, weight=w, loss_type=loss_type)
        if not jnp.allclose(got, ref, rtol=1e-4, atol=1e-2):
            ok = False
            print(f"MISMATCH n={n} brows={brows} {loss_type} w={w_kind}: "
                  f"{got} vs {ref}")

    # Small configs: single tile, auto 2-tile megacore split, explicit tiny tile.
    for n, brows in ((200, None), (2000, None), (2000, 8)):
        pred = jnp.abs(jax.random.normal(k1, (n, 6), jnp.float32)) + 0.1
        target = jnp.abs(jax.random.normal(k2, (n, 6), jnp.float32)) + 0.1
        weight = jax.random.uniform(k3, (n,), jnp.float32)
        for loss_type in ('iou', 'linear_iou', 'giou'):
            for w_kind in ('none', 'rand', 'zero'):
                _check(n, brows, loss_type, w_kind, pred, target, weight)

    # Larger run exercising the big (chip-default) tile path.
    n = 70000
    pred = jnp.abs(jax.random.normal(k1, (n, 6), jnp.float32)) + 0.1
    target = jnp.abs(jax.random.normal(k2, (n, 6), jnp.float32)) + 0.1
    weight = jax.random.uniform(k3, (n,), jnp.float32)
    _check(n, None, 'iou', 'none', pred, target, weight)
    _check(n, None, 'giou', 'rand', pred, target, weight)

    if ok:
        print("KERNEL_OK")
</pallas_src>

<mosaic_0001>
module attributes {stable_mosaic.version = 11 : i64} {
  func.func @_iou_loss_kernel(%arg0: i32, %arg1: memref<1xi32, #tpu.memory_space<smem>>, %arg2: memref<6x8x128xf32, #tpu.memory_space<vmem>>, %arg3: memref<6x8x128xf32, #tpu.memory_space<vmem>>, %arg4: memref<1x8x128xf32, #tpu.memory_space<vmem>>) attributes {dimension_semantics = [#tpu.dimension_semantics<parallel>], iteration_bounds = array<i64: 1>, scalar_prefetch = 1 : i64, scratch_operands = 0 : i64, tpu.core_type = #tpu.core_type<tc>, window_params = [{transform_indices = @transform_0, window_bounds = array<i64: 6, 8, 128>}, {transform_indices = @transform_1, window_bounds = array<i64: 6, 8, 128>}, {transform_indices = @transform_2, window_bounds = array<i64: 1, 8, 128>}]} {
    %c0 = arith.constant 0 : index
    %c0_0 = arith.constant 0 : index
    %c0_1 = arith.constant 0 : index
    %0 = vector.load %arg2[%c0, %c0_0, %c0_1] : memref<6x8x128xf32, #tpu.memory_space<vmem>>, vector<6x8x128xf32>
    %c0_2 = arith.constant 0 : index
    %c0_3 = arith.constant 0 : index
    %c0_4 = arith.constant 0 : index
    %1 = vector.load %arg3[%c0_2, %c0_3, %c0_4] : memref<6x8x128xf32, #tpu.memory_space<vmem>>, vector<6x8x128xf32>
    %2 = vector.extract_strided_slice %0 {offsets = [0, 0, 0], sizes = [1, 8, 128], strides = [1, 1, 1]} : vector<6x8x128xf32> to vector<1x8x128xf32>
    %3 = vector.shape_cast %2 : vector<1x8x128xf32> to vector<8x128xf32>
    %4 = vector.extract_strided_slice %0 {offsets = [1, 0, 0], sizes = [1, 8, 128], strides = [1, 1, 1]} : vector<6x8x128xf32> to vector<1x8x128xf32>
    %5 = vector.shape_cast %4 : vector<1x8x128xf32> to vector<8x128xf32>
    %6 = vector.extract_strided_slice %0 {offsets = [2, 0, 0], sizes = [1, 8, 128], strides = [1, 1, 1]} : vector<6x8x128xf32> to vector<1x8x128xf32>
    %7 = vector.shape_cast %6 : vector<1x8x128xf32> to vector<8x128xf32>
    %8 = vector.extract_strided_slice %0 {offsets = [3, 0, 0], sizes = [1, 8, 128], strides = [1, 1, 1]} : vector<6x8x128xf32> to vector<1x8x128xf32>
    %9 = vector.shape_cast %8 : vector<1x8x128xf32> to vector<8x128xf32>
    %10 = vector.extract_strided_slice %0 {offsets = [4, 0, 0], sizes = [1, 8, 128], strides = [1, 1, 1]} : vector<6x8x128xf32> to vector<1x8x128xf32>
    %11 = vector.shape_cast %10 : vector<1x8x128xf32> to vector<8x128xf32>
    %12 = vector.extract_strided_slice %0 {offsets = [5, 0, 0], sizes = [1, 8, 128], strides = [1, 1, 1]} : vector<6x8x128xf32> to vector<1x8x128xf32>
    %13 = vector.shape_cast %12 : vector<1x8x128xf32> to vector<8x128xf32>
    %14 = vector.extract_strided_slice %1 {offsets = [0, 0, 0], sizes = [1, 8, 128], strides = [1, 1, 1]} : vector<6x8x128xf32> to vector<1x8x128xf32>
    %15 = vector.shape_cast %14 : vector<1x8x128xf32> to vector<8x128xf32>
    %16 = vector.extract_strided_slice %1 {offsets = [1, 0, 0], sizes = [1, 8, 128], strides = [1, 1, 1]} : vector<6x8x128xf32> to vector<1x8x128xf32>
    %17 = vector.shape_cast %16 : vector<1x8x128xf32> to vector<8x128xf32>
    %18 = vector.extract_strided_slice %1 {offsets = [2, 0, 0], sizes = [1, 8, 128], strides = [1, 1, 1]} : vector<6x8x128xf32> to vector<1x8x128xf32>
    %19 = vector.shape_cast %18 : vector<1x8x128xf32> to vector<8x128xf32>
    %20 = vector.extract_strided_slice %1 {offsets = [3, 0, 0], sizes = [1, 8, 128], strides = [1, 1, 1]} : vector<6x8x128xf32> to vector<1x8x128xf32>
    %21 = vector.shape_cast %20 : vector<1x8x128xf32> to vector<8x128xf32>
    %22 = vector.extract_strided_slice %1 {offsets = [4, 0, 0], sizes = [1, 8, 128], strides = [1, 1, 1]} : vector<6x8x128xf32> to vector<1x8x128xf32>
    %23 = vector.shape_cast %22 : vector<1x8x128xf32> to vector<8x128xf32>
    %24 = vector.extract_strided_slice %1 {offsets = [5, 0, 0], sizes = [1, 8, 128], strides = [1, 1, 1]} : vector<6x8x128xf32> to vector<1x8x128xf32>
    %25 = vector.shape_cast %24 : vector<1x8x128xf32> to vector<8x128xf32>
    %26 = arith.minimumf %0, %1 : vector<6x8x128xf32>
    %27 = vector.extract_strided_slice %26 {offsets = [0, 0, 0], sizes = [1, 8, 128], strides = [1, 1, 1]} : vector<6x8x128xf32> to vector<1x8x128xf32>
    %28 = vector.shape_cast %27 : vector<1x8x128xf32> to vector<8x128xf32>
    %29 = vector.extract_strided_slice %26 {offsets = [1, 0, 0], sizes = [1, 8, 128], strides = [1, 1, 1]} : vector<6x8x128xf32> to vector<1x8x128xf32>
    %30 = vector.shape_cast %29 : vector<1x8x128xf32> to vector<8x128xf32>
    %31 = vector.extract_strided_slice %26 {offsets = [2, 0, 0], sizes = [1, 8, 128], strides = [1, 1, 1]} : vector<6x8x128xf32> to vector<1x8x128xf32>
    %32 = vector.shape_cast %31 : vector<1x8x128xf32> to vector<8x128xf32>
    %33 = vector.extract_strided_slice %26 {offsets = [3, 0, 0], sizes = [1, 8, 128], strides = [1, 1, 1]} : vector<6x8x128xf32> to vector<1x8x128xf32>
    %34 = vector.shape_cast %33 : vector<1x8x128xf32> to vector<8x128xf32>
    %35 = vector.extract_strided_slice %26 {offsets = [4, 0, 0], sizes = [1, 8, 128], strides = [1, 1, 1]} : vector<6x8x128xf32> to vector<1x8x128xf32>
    %36 = vector.shape_cast %35 : vector<1x8x128xf32> to vector<8x128xf32>
    %37 = vector.extract_strided_slice %26 {offsets = [5, 0, 0], sizes = [1, 8, 128], strides = [1, 1, 1]} : vector<6x8x128xf32> to vector<1x8x128xf32>
    %38 = vector.shape_cast %37 : vector<1x8x128xf32> to vector<8x128xf32>
    %39 = arith.addf %15, %21 : vector<8x128xf32>
    %40 = arith.addf %17, %23 : vector<8x128xf32>
    %41 = arith.mulf %39, %40 : vector<8x128xf32>
    %42 = arith.addf %19, %25 : vector<8x128xf32>
    %43 = arith.mulf %41, %42 : vector<8x128xf32>
    %44 = arith.addf %3, %9 : vector<8x128xf32>
    %45 = arith.addf %5, %11 : vector<8x128xf32>
    %46 = arith.mulf %44, %45 : vector<8x128xf32>
    %47 = arith.addf %7, %13 : vector<8x128xf32>
    %48 = arith.mulf %46, %47 : vector<8x128xf32>
    %49 = arith.addf %28, %34 : vector<8x128xf32>
    %50 = arith.addf %36, %30 : vector<8x128xf32>
    %51 = arith.addf %32, %38 : vector<8x128xf32>
    %52 = arith.mulf %49, %50 : vector<8x128xf32>
    %53 = arith.mulf %52, %51 : vector<8x128xf32>
    %54 = arith.addf %43, %48 : vector<8x128xf32>
    %55 = arith.subf %54, %53 : vector<8x128xf32>
    %cst = arith.constant 1.000000e+00 : f32
    %56 = vector.broadcast %cst : f32 to vector<8x128xf32>
    %57 = arith.addf %53, %56 : vector<8x128xf32>
    %cst_5 = arith.constant 1.000000e+00 : f32
    %58 = vector.broadcast %cst_5 : f32 to vector<8x128xf32>
    %59 = arith.addf %55, %58 : vector<8x128xf32>
    %60 = arith.divf %57, %59 : vector<8x128xf32>
    %61 = math.log %60 : vector<8x128xf32>
    %cst_6 = arith.constant 0.000000e+00 : f32
    %62 = vector.broadcast %cst_6 : f32 to vector<8x128xf32>
    %63 = arith.subf %62, %61 : vector<8x128xf32>
    %c0_7 = arith.constant 0 : index
    %c0_8 = arith.constant 0 : index
    %c0_9 = arith.constant 0 : index
    %64 = vector.load %arg4[%c0_7, %c0_8, %c0_9] : memref<1x8x128xf32, #tpu.memory_space<vmem>>, vector<1x8x128xf32>
    %65 = vector.shape_cast %64 : vector<1x8x128xf32> to vector<8x128xf32>
    %66 = vector.shape_cast %63 : vector<8x128xf32> to vector<1x8x128xf32>
    tpu.vector_store %arg4[%c0_7, %c0_8, %c0_9], %66 {strides = array<i32>} : memref<1x8x128xf32, #tpu.memory_space<vmem>>, vector<1x8x128xf32>,
    return
  }
  func.func @transform_0(%arg0: i32, %arg1: memref<1xi32, #tpu.memory_space<smem>>) -> (i32, i32, i32) {
    %c0_i32 = arith.constant 0 : i32
    %c0_i32_0 = arith.constant 0 : i32
    %c0_i32_1 = arith.constant 0 : i32
    return %c0_i32, %arg0, %c0_i32_0 : i32, i32, i32
  }
  func.func @transform_1(%arg0: i32, %arg1: memref<1xi32, #tpu.memory_space<smem>>) -> (i32, i32, i32) {
    %c0_i32 = arith.constant 0 : i32
    %c0_i32_0 = arith.constant 0 : i32
    %c0_i32_1 = arith.constant 0 : i32
    return %c0_i32, %arg0, %c0_i32_0 : i32, i32, i32
  }
  func.func @transform_2(%arg0: i32, %arg1: memref<1xi32, #tpu.memory_space<smem>>) -> (i32, i32, i32) {
    %c0_i32 = arith.constant 0 : i32
    %c0_i32_0 = arith.constant 0 : i32
    %c0_i32_1 = arith.constant 0 : i32
    return %arg0, %c0_i32, %c0_i32_0 : i32, i32, i32
  }
}

</mosaic_0001>

<llo_original>
// kernel: iou_loss.1
$region0: #{iou_loss.1}
  #allocation0 [shape = 'u32[]', space=smem, size = 0x4, offset = 0x4, fixed_abs, tag = 'smem constant byte address 0x4 - core index']
  #allocation1 [shape = 'u32[72,128]{1,0:T(1,128)}', space=vmem, size = 0x9000, scoped, tag = 'internal scratch']
  #allocation2 [shape = 's32[1]{0}', space=sflag, size = 0x4, scoped, tag = 'scoped memory for iou_loss.1']
  #allocation3 [shape = 's32[1]{0:T(128)S(6)}', space=smem, size = 0x200, scoped, tag = 'prefetched SMEM operand 0']
  %s0 = inlined_call_operand.<no memory space> [shape: s32[1], index: 0, kind: input, shape index: {}]
  %s1 = inlined_call_operand.vmem [shape: f32[6,8,128], index: 1, kind: input, shape index: {}]
  %s2 = inlined_call_operand.vmem [shape: f32[6,8,128], index: 2, kind: input, shape index: {}]
  %s3 = inlined_call_operand.vmem [shape: f32[1,8,128], index: 3, kind: output, shape index: {}]
  %s4 = sld [smem:[#allocation0]]
  $region18: #{iou_loss.1} parent=0
    _
  %s6 = ssub.s32 1, %s4
  %s7 = scalar_select 0, %s6, %s4
  %8 = sst [smem:[#allocation3]] %s0
  // Predicated region
  $region2: #{iou_loss.1} parent=0 // pred_check
    _
  $region3: #{iou_loss.1} parent=0 // pred_check_branch
    %10 = sbr.rel (0) target = $region5
  $region4: #{iou_loss.1} parent=0 // pred_region
    _
  $region5: #{iou_loss.1} parent=0 // pred_fallthru
    _
  // Predicated region
  $region6: #{iou_loss.1} parent=0 // pred_check
    _
  $region7: #{iou_loss.1} parent=0 // pred_check_branch
    %12 = sbr.rel (0) target = $region9
  $region8: #{iou_loss.1} parent=0 // pred_region
    _
  $region9: #{iou_loss.1} parent=0 // pred_fallthru
    _
  %v13 = vld [vmem:[%s1] sm:$0xff]
  %v14 = vld [vmem:[%s1 + $0x8] sm:$0xff]
  %v15 = vld [vmem:[%s1 + $0x10] sm:$0xff]
  %v16 = vld [vmem:[%s1 + $0x18] sm:$0xff]
  %v17 = vld [vmem:[%s1 + $0x20] sm:$0xff]
  %v18 = vld [vmem:[%s1 + $0x28] sm:$0xff]
  %v19 = vld [vmem:[%s2] sm:$0xff]
  %v20 = vld [vmem:[%s2 + $0x8] sm:$0xff]
  %v21 = vld [vmem:[%s2 + $0x10] sm:$0xff]
  %v22 = vld [vmem:[%s2 + $0x18] sm:$0xff]
  %v23 = vld [vmem:[%s2 + $0x20] sm:$0xff]
  %v24 = vld [vmem:[%s2 + $0x28] sm:$0xff]
  %v25 = vmin.f32 %v13, %v19
  %v26 = vmin.f32 %v14, %v20
  %v27 = vmin.f32 %v15, %v21
  %v28 = vmin.f32 %v16, %v22
  %v29 = vmin.f32 %v17, %v23
  %v30 = vmin.f32 %v18, %v24
  %v31 = vadd.f32 %v19, %v22
  %v32 = vadd.f32 %v20, %v23
  %v33 = vmul.f32 %v31, %v32
  %v34 = vadd.f32 %v21, %v24
  %v35 = vmul.f32 %v33, %v34
  %v36 = vadd.f32 %v13, %v16
  %v37 = vadd.f32 %v14, %v17
  %v38 = vmul.f32 %v36, %v37
  %v39 = vadd.f32 %v15, %v18
  %v40 = vmul.f32 %v38, %v39
  %v41 = vadd.f32 %v25, %v28
  %v42 = vadd.f32 %v29, %v26
  %v43 = vadd.f32 %v27, %v30
  %v44 = vmul.f32 %v41, %v42
  %v45 = vmul.f32 %v44, %v43
  %v46 = vadd.f32 %v35, %v40
  %v47 = vsub.f32 %v46, %v45
  %v48 = vadd.f32 %v45, 1.0
  %v49 = vadd.f32 %v47, 1.0
  %v50 = vrcp.pop %v49
  %v51 = vmul.f32 %v49, %v50
  %v52 = vsub.f32 1.0, %v51
  %v53 = vmul.f32 %v50, %v52
  %v54 = vadd.f32 %v50, %v53
  %vm55 = vweird.f32 %v49
  %vm56 = vweird.f32 %v50
  %vm57 = vmor %vm55, %vm56
  %v58 = vsel %vm57, %v50, %v54
  %v59 = vand.u32 2147483647, %v49
  %vm60 = vcmp.eq.f32.partialorder %v59, 8.507059e+37
  %v61 = vand.u32 %v49, 2147483648
  %v62 = vor.u32 1.1754944e-38, %v61
  %v63 = vsel %vm60, %v62, %v58
  %v64 = vmul.f32 %v48, %v63
  %v65 = vlog2.pop %v64
  %v66 = vmul.f32 %v65, 0.6931472
  %v67 = vsub.f32 0.0, %v66
  %68 = vst [vmem:[%s3] sm:$0xff] %v67
  // Predicated region
  $region10: #{iou_loss.1} parent=0 // pred_check
    _
  $region11: #{iou_loss.1} parent=0 // pred_check_branch
    %70 = sbr.rel (0) target = $region13
  $region12: #{iou_loss.1} parent=0 // pred_region
    _
  $region13: #{iou_loss.1} parent=0 // pred_fallthru
    _
  // Predicated region
  $region14: #{iou_loss.1} parent=0 // pred_check
    _
  $region15: #{iou_loss.1} parent=0 // pred_check_branch
    %72 = sbr.rel (0) target = $region17
  $region16: #{iou_loss.1} parent=0 // pred_region
    _
  $region17: #{iou_loss.1} parent=0 // pred_fallthru
    _

</llo_original>
